<compile_context>
chip_gen: v5e
topology: v5e:2x2
jax: 0.10.0
libtpu: 0.0.40
codegen_flags: <defaults>
</compile_context>

<pallas_src>
import math

import jax
import jax.numpy as jnp
import numpy as np
from jax.experimental import pallas as pl
from jax.experimental.pallas import tpu as pltpu


# ---------------------------------------------------------------------------
# Fused kernel: global-avg-pool -> 1x1 -> swish -> 1x1 -> sigmoid -> gate * z
# ---------------------------------------------------------------------------
def _se_gate_kernel(x_ref, z_ref, w1_ref, b1_ref, w2_ref, b2_ref, o_ref, gate_sc):
    # x_ref : (1, Cin,  HWx)  full per-image block (native dtype), channels on sublanes
    # z_ref : (1, Cout, tz)   one lane-dense spatial tile of z
    # w1_ref: (Csq, Cin)   b1_ref: (Csq, 1)
    # w2_ref: (Cout, Csq)  b2_ref: (Cout, 1)
    # o_ref : (1, Cout, tz)
    # gate_sc: VMEM (Cout, 1) scratch (output dtype) holding sigmoid(se_expand(...))

    @pl.when(pl.program_id(1) == 0)
    def _():
        x = x_ref[0]                                            # (Cin, HWx), native dtype
        hw = x.shape[1]
        ones = jnp.ones((hw, 1), dtype=x.dtype)
        # Global average pool as an MXU matvec with f32 accumulation — no full
        # f32 copy of the x block is materialized.
        s = jnp.dot(x, ones, preferred_element_type=jnp.float32)       # (Cin, 1)
        avg = s * (1.0 / hw)
        y = jnp.dot(w1_ref[...], avg,
                    preferred_element_type=jnp.float32) + b1_ref[...]   # (Csq, 1)
        y = y * jax.nn.sigmoid(y)                               # swish
        y = jnp.dot(w2_ref[...], y,
                    preferred_element_type=jnp.float32) + b2_ref[...]   # (Cout, 1)
        gate_sc[...] = jax.nn.sigmoid(y).astype(gate_sc.dtype)

    # Steady-state loop: single multiply in the output's native dtype,
    # lane-dense store (no per-tile casts).
    o_ref[0] = z_ref[0] * gate_sc[...]


def _pick_tz(hw, cap=4096):
    """Spatial tile for z/out: lane-dense (multiple of 128) whenever HW >= 128."""
    if hw <= 128:
        return hw                       # single (possibly masked) block
    if hw % 128 == 0:
        return min(hw, cap)
    # Not a multiple of 128 (e.g. 3136, 784, 196): lane-dense tiles + one small
    # masked remainder tile instead of a single fully-masked block.
    return min((hw // 128) * 128, cap)


# ---------------------------------------------------------------------------
# Wrapper: layout plumbing only (flatten spatial so blocks are lane-dense)
# ---------------------------------------------------------------------------
def se_module_diff(x_nchw, z_nchw, params, avg_size=1):
    # TODO(synk): only the Avg_size == 1 path (module default) is implemented.
    assert avg_size == 1, "Avg_size != 1 not implemented"

    N, Cin, Hx, Wx = x_nchw.shape
    Nz, Cout, Hz, Wz = z_nchw.shape
    assert N == Nz
    HWx = Hx * Wx
    HWz = Hz * Wz

    w1 = params["w1"]            # (Csq, Cin)  == torch _se_reduce.weight[:, :, 0, 0]
    b1 = params["b1"]            # (Csq,)
    w2 = params["w2"]            # (Cout, Csq) == torch _se_expand.weight[:, :, 0, 0]
    b2 = params["b2"]            # (Cout,)
    Csq = w1.shape[0]
    assert w2.shape[0] == Cout

    # Native dtypes throughout: reshapes of contiguous arrays are free, and no
    # wrapper-side astype (would be an extra HBM pass + 2x x DMA bytes for bf16).
    x2 = x_nchw.reshape(N, Cin, HWx)
    z2 = z_nchw.reshape(N, Cout, HWz)

    tz = _pick_tz(HWz)
    n_tiles = pl.cdiv(HWz, tz)

    out = pl.pallas_call(
        _se_gate_kernel,
        out_shape=jax.ShapeDtypeStruct((N, Cout, HWz), z_nchw.dtype),
        grid=(N, n_tiles),
        in_specs=[
            pl.BlockSpec((1, Cin, HWx), lambda n, t: (n, 0, 0)),   # x: resident per image
            pl.BlockSpec((1, Cout, tz), lambda n, t: (n, 0, t)),   # z: spatial tiles
            pl.BlockSpec((Csq, Cin), lambda n, t: (0, 0)),
            pl.BlockSpec((Csq, 1), lambda n, t: (0, 0)),
            pl.BlockSpec((Cout, Csq), lambda n, t: (0, 0)),
            pl.BlockSpec((Cout, 1), lambda n, t: (0, 0)),
        ],
        out_specs=pl.BlockSpec((1, Cout, tz), lambda n, t: (n, 0, t)),
        scratch_shapes=[pltpu.VMEM((Cout, 1), z_nchw.dtype)],
        compiler_params=pltpu.CompilerParams(
            dimension_semantics=("parallel", "arbitrary"),
            vmem_limit_bytes=48 * 1024 * 1024),
    )(x2, z2, w1, b1.reshape(Csq, 1), w2, b2.reshape(Cout, 1))

    return out.reshape(N, Cout, Hz, Wz)


# ---------------------------------------------------------------------------
# Deterministic parameter init (mirrors torch reset_parameters: weight ~
# N(0, sqrt(2 / (k*k*out_channels))), bias = 0; k = 1 for both convs)
# ---------------------------------------------------------------------------
def init_params(key, cin, csq, cout):
    k1, k2 = jax.random.split(key)
    return {
        "w1": jax.random.normal(k1, (csq, cin), jnp.float32) * math.sqrt(2.0 / csq),
        "b1": jnp.zeros((csq,), jnp.float32),
        "w2": jax.random.normal(k2, (cout, csq), jnp.float32) * math.sqrt(2.0 / cout),
        "b2": jnp.zeros((cout,), jnp.float32),
    }


# ---------------------------------------------------------------------------
# Pure-JAX reference (same math) for validation
# ---------------------------------------------------------------------------
def reference(x, z, params):
    avg = jnp.mean(x.astype(jnp.float32), axis=(2, 3), keepdims=True)      # (N, Cin, 1, 1)
    y = jnp.einsum("nchw,oc->nohw", avg, params["w1"]) \
        + params["b1"][None, :, None, None]
    y = y * jax.nn.sigmoid(y)
    y = jnp.einsum("nchw,oc->nohw", y, params["w2"]) \
        + params["b2"][None, :, None, None]
    return (jax.nn.sigmoid(y).astype(z.dtype) * z).astype(z.dtype)


if __name__ == "__main__":
    N, Cin, H, W = 2, 4, 16, 16        # x: (N, inp, H, W)
    Cout = 8                           # oup
    se_ratio = 1
    Csq = max(1, int(Cin / se_ratio))  # num_squeezed_channels

    key = jax.random.PRNGKey(0)
    kx, kz, kp = jax.random.split(key, 3)
    x = jax.random.normal(kx, (N, Cin, H, W), jnp.float32)
    z = jax.random.normal(kz, (N, Cout, H, W), jnp.float32)
    params = init_params(kp, Cin, Csq, Cout)

    out = se_module_diff(x, z, params)
    out = jax.block_until_ready(out)
    assert out.shape == (N, Cout, H, W), out.shape

    ref = reference(x, z, params)
    np.testing.assert_allclose(np.asarray(out), np.asarray(ref), rtol=1e-3, atol=1e-3)

    print("KERNEL_OK")
</pallas_src>

<mosaic_0001>
module attributes {stable_mosaic.version = 11 : i64} {
  func.func @_se_gate_kernel(%arg0: i32, %arg1: i32, %arg2: memref<1x4x256xf32, #tpu.memory_space<vmem>>, %arg3: memref<1x8x256xf32, #tpu.memory_space<vmem>>, %arg4: memref<4x4xf32, #tpu.memory_space<vmem>>, %arg5: memref<4x1xf32, #tpu.memory_space<vmem>>, %arg6: memref<8x4xf32, #tpu.memory_space<vmem>>, %arg7: memref<8x1xf32, #tpu.memory_space<vmem>>, %arg8: memref<1x8x256xf32, #tpu.memory_space<vmem>>, %arg9: memref<8x1xf32, #tpu.memory_space<vmem>>) attributes {dimension_semantics = [#tpu.dimension_semantics<parallel>, #tpu.dimension_semantics<arbitrary>], iteration_bounds = array<i64: 2, 1>, scalar_prefetch = 0 : i64, scratch_operands = 1 : i64, tpu.core_type = #tpu.core_type<tc>, window_params = [{transform_indices = @transform_0, window_bounds = array<i64: 1, 4, 256>}, {transform_indices = @transform_1, window_bounds = array<i64: 1, 8, 256>}, {pipeline_mode = #tpu.pipeline_mode<synchronous>, transform_indices = @transform_2, window_bounds = array<i64: 4, 4>}, {pipeline_mode = #tpu.pipeline_mode<synchronous>, transform_indices = @transform_3, window_bounds = array<i64: 4, 1>}, {pipeline_mode = #tpu.pipeline_mode<synchronous>, transform_indices = @transform_4, window_bounds = array<i64: 8, 4>}, {pipeline_mode = #tpu.pipeline_mode<synchronous>, transform_indices = @transform_5, window_bounds = array<i64: 8, 1>}, {transform_indices = @transform_6, window_bounds = array<i64: 1, 8, 256>}]} {
    %c0_i32 = arith.constant 0 : i32
    %0 = arith.cmpi eq, %arg1, %c0_i32 : i32
    %1 = arith.extui %0 : i1 to i32
    %c0_i32_0 = arith.constant 0 : i32
    %2 = arith.cmpi ne, %1, %c0_i32_0 : i32
    scf.if %2 {
      %c0_8 = arith.constant 0 : index
      %c0_9 = arith.constant 0 : index
      %c0_10 = arith.constant 0 : index
      %11 = vector.load %arg2[%c0_8, %c0_9, %c0_10] : memref<1x4x256xf32, #tpu.memory_space<vmem>>, vector<1x4x256xf32>
      %12 = vector.shape_cast %11 : vector<1x4x256xf32> to vector<4x256xf32>
      %cst = arith.constant 1.000000e+00 : f32
      %13 = vector.broadcast %cst : f32 to vector<256x1xf32>
      %cst_11 = arith.constant dense<0.000000e+00> : vector<4x1xf32>
      %14 = tpu.matmul %12, %13, %cst_11 {dimension_numbers = #tpu.dot_dimension_numbers<[1], [0], [0], [1], [0, 0, 1, 1], [], []>} : vector<4x256xf32>, vector<256x1xf32>, vector<4x1xf32> -> vector<4x1xf32>
      %cst_12 = arith.constant 3.906250e-03 : f32
      %15 = vector.broadcast %cst_12 : f32 to vector<4x1xf32>
      %16 = arith.mulf %14, %15 : vector<4x1xf32>
      %c0_13 = arith.constant 0 : index
      %c0_14 = arith.constant 0 : index
      %17 = vector.load %arg4[%c0_13, %c0_14] : memref<4x4xf32, #tpu.memory_space<vmem>>, vector<4x4xf32>
      %cst_15 = arith.constant dense<0.000000e+00> : vector<4x1xf32>
      %18 = tpu.matmul %17, %16, %cst_15 {dimension_numbers = #tpu.dot_dimension_numbers<[1], [0], [0], [1], [0, 0, 1, 1], [], []>} : vector<4x4xf32>, vector<4x1xf32>, vector<4x1xf32> -> vector<4x1xf32>
      %c0_16 = arith.constant 0 : index
      %c0_17 = arith.constant 0 : index
      %19 = vector.load %arg5[%c0_16, %c0_17] : memref<4x1xf32, #tpu.memory_space<vmem>>, vector<4x1xf32>
      %20 = arith.addf %18, %19 : vector<4x1xf32>
      %21 = arith.negf %20 : vector<4x1xf32>
      %22 = math.exp %21 : vector<4x1xf32>
      %cst_18 = arith.constant 1.000000e+00 : f32
      %23 = vector.broadcast %cst_18 : f32 to vector<4x1xf32>
      %24 = arith.addf %23, %22 : vector<4x1xf32>
      %25 = arith.divf %23, %24 : vector<4x1xf32>
      %26 = arith.mulf %20, %25 : vector<4x1xf32>
      %c0_19 = arith.constant 0 : index
      %c0_20 = arith.constant 0 : index
      %27 = vector.load %arg6[%c0_19, %c0_20] : memref<8x4xf32, #tpu.memory_space<vmem>>, vector<8x4xf32>
      %cst_21 = arith.constant dense<0.000000e+00> : vector<8x1xf32>
      %28 = tpu.matmul %27, %26, %cst_21 {dimension_numbers = #tpu.dot_dimension_numbers<[1], [0], [0], [1], [0, 0, 1, 1], [], []>} : vector<8x4xf32>, vector<4x1xf32>, vector<8x1xf32> -> vector<8x1xf32>
      %c0_22 = arith.constant 0 : index
      %c0_23 = arith.constant 0 : index
      %29 = vector.load %arg7[%c0_22, %c0_23] : memref<8x1xf32, #tpu.memory_space<vmem>>, vector<8x1xf32>
      %30 = arith.addf %28, %29 : vector<8x1xf32>
      %31 = arith.negf %30 : vector<8x1xf32>
      %32 = math.exp %31 : vector<8x1xf32>
      %cst_24 = arith.constant 1.000000e+00 : f32
      %33 = vector.broadcast %cst_24 : f32 to vector<8x1xf32>
      %34 = arith.addf %33, %32 : vector<8x1xf32>
      %35 = arith.divf %33, %34 : vector<8x1xf32>
      %c0_25 = arith.constant 0 : index
      %c0_26 = arith.constant 0 : index
      %36 = vector.load %arg9[%c0_25, %c0_26] : memref<8x1xf32, #tpu.memory_space<vmem>>, vector<8x1xf32>
      tpu.vector_store %arg9[%c0_25, %c0_26], %35 {strides = array<i32>} : memref<8x1xf32, #tpu.memory_space<vmem>>, vector<8x1xf32>,
    } else {
    }
    %c0 = arith.constant 0 : index
    %c0_1 = arith.constant 0 : index
    %c0_2 = arith.constant 0 : index
    %3 = vector.load %arg3[%c0, %c0_1, %c0_2] : memref<1x8x256xf32, #tpu.memory_space<vmem>>, vector<1x8x256xf32>
    %4 = vector.shape_cast %3 : vector<1x8x256xf32> to vector<8x256xf32>
    %c0_3 = arith.constant 0 : index
    %c0_4 = arith.constant 0 : index
    %5 = vector.load %arg9[%c0_3, %c0_4] : memref<8x1xf32, #tpu.memory_space<vmem>>, vector<8x1xf32>
    %6 = vector.broadcast %5 : vector<8x1xf32> to vector<8x256xf32>
    %7 = arith.mulf %4, %6 : vector<8x256xf32>
    %c0_5 = arith.constant 0 : index
    %c0_6 = arith.constant 0 : index
    %c0_7 = arith.constant 0 : index
    %8 = vector.load %arg8[%c0_5, %c0_6, %c0_7] : memref<1x8x256xf32, #tpu.memory_space<vmem>>, vector<1x8x256xf32>
    %9 = vector.shape_cast %8 : vector<1x8x256xf32> to vector<8x256xf32>
    %10 = vector.shape_cast %7 : vector<8x256xf32> to vector<1x8x256xf32>
    tpu.vector_store %arg8[%c0_5, %c0_6, %c0_7], %10 {strides = array<i32>} : memref<1x8x256xf32, #tpu.memory_space<vmem>>, vector<1x8x256xf32>,
    return
  }
  func.func @transform_0(%arg0: i32, %arg1: i32) -> (i32, i32, i32) {
    %c0_i32 = arith.constant 0 : i32
    %c0_i32_0 = arith.constant 0 : i32
    %c0_i32_1 = arith.constant 0 : i32
    return %arg0, %c0_i32, %c0_i32_0 : i32, i32, i32
  }
  func.func @transform_1(%arg0: i32, %arg1: i32) -> (i32, i32, i32) {
    %c0_i32 = arith.constant 0 : i32
    %c0_i32_0 = arith.constant 0 : i32
    return %arg0, %c0_i32, %arg1 : i32, i32, i32
  }
  func.func @transform_2(%arg0: i32, %arg1: i32) -> (i32, i32) {
    %c0_i32 = arith.constant 0 : i32
    %c0_i32_0 = arith.constant 0 : i32
    %c0_i32_1 = arith.constant 0 : i32
    return %c0_i32, %c0_i32_0 : i32, i32
  }
  func.func @transform_3(%arg0: i32, %arg1: i32) -> (i32, i32) {
    %c0_i32 = arith.constant 0 : i32
    %c0_i32_0 = arith.constant 0 : i32
    %c0_i32_1 = arith.constant 0 : i32
    return %c0_i32, %c0_i32_0 : i32, i32
  }
  func.func @transform_4(%arg0: i32, %arg1: i32) -> (i32, i32) {
    %c0_i32 = arith.constant 0 : i32
    %c0_i32_0 = arith.constant 0 : i32
    %c0_i32_1 = arith.constant 0 : i32
    return %c0_i32, %c0_i32_0 : i32, i32
  }
  func.func @transform_5(%arg0: i32, %arg1: i32) -> (i32, i32) {
    %c0_i32 = arith.constant 0 : i32
    %c0_i32_0 = arith.constant 0 : i32
    %c0_i32_1 = arith.constant 0 : i32
    return %c0_i32, %c0_i32_0 : i32, i32
  }
  func.func @transform_6(%arg0: i32, %arg1: i32) -> (i32, i32, i32) {
    %c0_i32 = arith.constant 0 : i32
    %c0_i32_0 = arith.constant 0 : i32
    return %arg0, %c0_i32, %arg1 : i32, i32, i32
  }
}

</mosaic_0001>

<llo_original>
// kernel: tpu_custom_call.1
$region0: #{tpu_custom_call.1}
  #allocation0 [shape = 'u32[]', space=smem, size = 0x4, offset = 0x4, fixed_abs, tag = 'smem constant byte address 0x4 - core index']
  #allocation1 [shape = 'u32[72,128]{1,0:T(1,128)}', space=vmem, size = 0x9000, scoped, tag = 'internal scratch']
  #allocation2 [shape = 'f32[8,1]{1,0:T(8,128)}', space=vmem, size = 0x1000, scoped, tag = 'scratch operand']
  %s0 = inlined_call_operand.vmem [shape: f32[2,4,256], index: 0, kind: input, shape index: {}]
  %s1 = inlined_call_operand.hbm [shape: f32[2,8,256], index: 1, kind: input, shape index: {}]
  %s2 = inlined_call_operand.vmem [shape: f32[4,4], index: 2, kind: input, shape index: {}]
  %s3 = inlined_call_operand.vmem [shape: f32[4,1], index: 3, kind: input, shape index: {}]
  %s4 = inlined_call_operand.vmem [shape: f32[8,4], index: 4, kind: input, shape index: {}]
  %s5 = inlined_call_operand.vmem [shape: f32[8,1], index: 5, kind: input, shape index: {}]
  %s6 = inlined_call_operand.hbm [shape: f32[2,8,256], index: 6, kind: output, shape index: {}]
  %s7 = sld [smem:[#allocation0]]
  $region65: #{tpu_custom_call.1} parent=0
    _
  %s9 = ssub.s32 1, %s7
  %s10 = scalar_select 0, %s9, %s7
  $region1: #{tpu_custom_call.1} parent=0
    #allocation3 [shape = 'u8[16384]{0}', space=vmem, size = 0x4000, scoped, tag = 'input window, operand 1']
    #allocation4 [shape = 's32[2]{0}', space=sflag, size = 0x8, scoped, tag = 'scoped memory for tpu_custom_call.1']
    #allocation5 [shape = 's32[2]{0}', space=sflag, size = 0x8, scoped, tag = 'scoped memory for tpu_custom_call.1']
    #allocation6 [shape = 'u8[16384]{0}', space=vmem, size = 0x4000, scoped, tag = 'output window, operand 0']
    %11 = vsyncpa [#allocation4], 0
    %s12 = scalar_lea.sflag [#allocation4], 1
    %13 = vsyncpa %s12, 0
    %14 = vsyncpa [#allocation5], 0
    %s15 = scalar_lea.sflag [#allocation5], 1
    %16 = vsyncpa %s15, 0
    loop: start=0, step=1, limit=4
    $region2: #{tpu_custom_call.1} parent=1 // loop_pre_header
      _
    $region3: #{tpu_custom_call.1} parent=1 // loop_header
      %s18 = sphi 0, %s22
      %p19 = scmp.ge.s32.totalorder %s18, 4
      %s25 = sphi 0, %s37
      %s26 = sphi 0, %s33
      %s27 = sphi 0, %s25
      %s28 = sphi 0, %s26
      %s29 = sphi 0, %s27
      %s30 = sphi 0, %s28
      %s40 = sphi 0, %s42
      %s43 = sphi 0, %s40
      %s44 = sphi 0, %s43
      %s60 = sphi 0, %s44
      %s68 = sphi 0, %s70
      %s71 = sphi 0, %s68
      %s72 = sphi 0, %s71
      %s88 = sphi 0, %s72
      %s92 = sphi 0, %s92
      %s94 = sphi 0, %s92
      %s95 = sphi 0, %s94
      %s109 = sphi 0, %s95
      %s113 = sphi 0, %s113
      %s115 = sphi 0, %s113
      %s116 = sphi 0, %s115
      %s130 = sphi 0, %s116
      %s134 = sphi 0, %s134
      %s136 = sphi 0, %s134
      %s137 = sphi 0, %s136
      %s151 = sphi 0, %s137
      %s155 = sphi 0, %s155
      %s157 = sphi 0, %s155
      %s158 = sphi 0, %s157
      %s172 = sphi 0, %s158
      %s180 = sphi 0, %s182
      %s183 = sphi 0, %s180
      %s184 = sphi 0, %s183
      %s200 = sphi 0, %s184
    $region4: #{tpu_custom_call.1} parent=1 // loop_header_branch
      %21 = sbr.rel (%p19) target = $region8
    $region5: #{tpu_custom_call.1} parent=1 // loop_body
      %s23 = ssub.s32 %s18, 1
      %s24 = ssub.s32 %s18, 2
      %s31 = sadd.s32 1, %s26
      %p32 = scmp.ge.s32.totalorder %s31, 1
      %s33 = scalar_select %p32, 0, %s31
      %s34 = sadd.s32 1, %s25
      %s35 = scalar_select %p32, %s34, %s25
      %p36 = scmp.ge.s32.totalorder %s35, 2
      %s37 = scalar_select %p36, 0, %s35
      %s38 = ssub.s32 %s25, %s37
      %p39 = scmp.eq.s32.totalorder %s38, 0
      %s41 = sadd.s32 %s40, 1
      %s42 = scalar_select %p39, %s40, %s41
      %p45 = pneg %p39
      %p46 = scmp.eq.s32.totalorder %s18, 1
      %p47 = por %p45, %p46
      %p48 = scmp.ne.s32.totalorder %s40, %s43
      %p49 = scmp.eq.s32.totalorder %s18, 0
      %p50 = por %p48, %p49
      %p51 = scmp.ne.s32.totalorder %s40, %s43
      %p52 = scmp.eq.s32.totalorder %s23, 1
      %p53 = por %p51, %p52
      %p54 = scmp.ne.s32.totalorder %s43, %s44
      %p55 = scmp.eq.s32.totalorder %s23, 0
      %p56 = por %p54, %p55
      %p57 = scmp.ne.s32.totalorder %s43, %s44
      %p58 = scmp.eq.s32.totalorder %s24, 1
      %p59 = por %p57, %p58
      %p61 = scmp.ne.s32.totalorder %s44, %s60
      %p62 = scmp.eq.s32.totalorder %s24, 0
      %p63 = por %p61, %p62
      %s64 = ssub.s32 %s25, %s37
      %s65 = ssub.s32 %s26, %s33
      %s66 = sor.u32 %s64, %s65
      %p67 = scmp.eq.s32.totalorder %s66, 0
      %s69 = sadd.s32 %s68, 1
      %s70 = scalar_select %p67, %s68, %s69
      %p73 = pneg %p67
      %p74 = scmp.eq.s32.totalorder %s18, 1
      %p75 = por %p73, %p74
      %p76 = scmp.ne.s32.totalorder %s68, %s71
      %p77 = scmp.eq.s32.totalorder %s18, 0
      %p78 = por %p76, %p77
      %p79 = scmp.ne.s32.totalorder %s68, %s71
      %p80 = scmp.eq.s32.totalorder %s23, 1
      %p81 = por %p79, %p80
      %p82 = scmp.ne.s32.totalorder %s71, %s72
      %p83 = scmp.eq.s32.totalorder %s23, 0
      %p84 = por %p82, %p83
      %p85 = scmp.ne.s32.totalorder %s71, %s72
      %p86 = scmp.eq.s32.totalorder %s24, 1
      %p87 = por %p85, %p86
      %p89 = scmp.ne.s32.totalorder %s72, %s88
      %p90 = scmp.eq.s32.totalorder %s24, 0
      %p91 = por %p89, %p90
      %s93 = sadd.s32 %s92, 1
      %p96 = scmp.eq.s32.totalorder %s18, 1
      %p97 = scmp.ne.s32.totalorder %s92, %s94
      %p98 = scmp.eq.s32.totalorder %s18, 0
      %p99 = por %p97, %p98
      %p100 = scmp.ne.s32.totalorder %s92, %s94
      %p101 = scmp.eq.s32.totalorder %s23, 1
      %p102 = por %p100, %p101
      %p103 = scmp.ne.s32.totalorder %s94, %s95
      %p104 = scmp.eq.s32.totalorder %s23, 0
      %p105 = por %p103, %p104
      %p106 = scmp.ne.s32.totalorder %s94, %s95
      %p107 = scmp.eq.s32.totalorder %s24, 1
      %p108 = por %p106, %p107
      %p110 = scmp.ne.s32.totalorder %s95, %s109
      %p111 = scmp.eq.s32.totalorder %s24, 0
      %p112 = por %p110, %p111
      %s114 = sadd.s32 %s113, 1
      %p117 = scmp.eq.s32.totalorder %s18, 1
      %p118 = scmp.ne.s32.totalorder %s113, %s115
      %p119 = scmp.eq.s32.totalorder %s18, 0
      %p120 = por %p118, %p119
      %p121 = scmp.ne.s32.totalorder %s113, %s115
      %p122 = scmp.eq.s32.totalorder %s23, 1
      %p123 = por %p121, %p122
      %p124 = scmp.ne.s32.totalorder %s115, %s116
      %p125 = scmp.eq.s32.totalorder %s23, 0
      %p126 = por %p124, %p125
      %p127 = scmp.ne.s32.totalorder %s115, %s116
      %p128 = scmp.eq.s32.totalorder %s24, 1
      %p129 = por %p127, %p128
      %p131 = scmp.ne.s32.totalorder %s116, %s130
      %p132 = scmp.eq.s32.totalorder %s24, 0
      %p133 = por %p131, %p132
      %s135 = sadd.s32 %s134, 1
      %p138 = scmp.eq.s32.totalorder %s18, 1
      %p139 = scmp.ne.s32.totalorder %s134, %s136
      %p140 = scmp.eq.s32.totalorder %s18, 0
      %p141 = por %p139, %p140
      %p142 = scmp.ne.s32.totalorder %s134, %s136
      %p143 = scmp.eq.s32.totalorder %s23, 1
      %p144 = por %p142, %p143
      %p145 = scmp.ne.s32.totalorder %s136, %s137
      %p146 = scmp.eq.s32.totalorder %s23, 0
      %p147 = por %p145, %p146
      %p148 = scmp.ne.s32.totalorder %s136, %s137
      %p149 = scmp.eq.s32.totalorder %s24, 1
      %p150 = por %p148, %p149
      %p152 = scmp.ne.s32.totalorder %s137, %s151
      %p153 = scmp.eq.s32.totalorder %s24, 0
      %p154 = por %p152, %p153
      %s156 = sadd.s32 %s155, 1
      %p159 = scmp.eq.s32.totalorder %s18, 1
      %p160 = scmp.ne.s32.totalorder %s155, %s157
      %p161 = scmp.eq.s32.totalorder %s18, 0
      %p162 = por %p160, %p161
      %p163 = scmp.ne.s32.totalorder %s155, %s157
      %p164 = scmp.eq.s32.totalorder %s23, 1
      %p165 = por %p163, %p164
      %p166 = scmp.ne.s32.totalorder %s157, %s158
      %p167 = scmp.eq.s32.totalorder %s23, 0
      %p168 = por %p166, %p167
      %p169 = scmp.ne.s32.totalorder %s157, %s158
      %p170 = scmp.eq.s32.totalorder %s24, 1
      %p171 = por %p169, %p170
      %p173 = scmp.ne.s32.totalorder %s158, %s172
      %p174 = scmp.eq.s32.totalorder %s24, 0
      %p175 = por %p173, %p174
      %s176 = ssub.s32 %s25, %s37
      %s177 = ssub.s32 %s26, %s33
      %s178 = sor.u32 %s176, %s177
      %p179 = scmp.eq.s32.totalorder %s178, 0
      %s181 = sadd.s32 %s180, 1
      %s182 = scalar_select %p179, %s180, %s181
      %p185 = pneg %p179
      %p186 = scmp.eq.s32.totalorder %s18, 1
      %p187 = por %p185, %p186
      %p188 = scmp.ne.s32.totalorder %s180, %s183
      %p189 = scmp.eq.s32.totalorder %s18, 0
      %p190 = por %p188, %p189
      %p191 = scmp.ne.s32.totalorder %s180, %s183
      %p192 = scmp.eq.s32.totalorder %s23, 1
      %p193 = por %p191, %p192
      %p194 = scmp.ne.s32.totalorder %s183, %s184
      %p195 = scmp.eq.s32.totalorder %s23, 0
      %p196 = por %p194, %p195
      %p197 = scmp.ne.s32.totalorder %s183, %s184
      %p198 = scmp.eq.s32.totalorder %s24, 1
      %p199 = por %p197, %p198
      %p201 = scmp.ne.s32.totalorder %s184, %s200
      %p202 = scmp.eq.s32.totalorder %s24, 0
      %p203 = por %p201, %p202
      %p204 = scmp.le.s32.totalorder 1, %s18
      %p205 = scmp.lt.s32.totalorder %s18, 3
      %p206 = pnand %p204, %p205
      %p207 = pneg %p206
      // Predicated region
      $region9: #{tpu_custom_call.1} parent=5 // pred_check
        _
      $region10: #{tpu_custom_call.1} parent=5 // pred_check_branch
        %209 = sbr.rel (%p206) target = $region12
      $region11: #{tpu_custom_call.1} parent=5 // pred_region
        %s210 = ssub.s32 %s18, 1
        // Predicated region
        $region13: #{tpu_custom_call.1} parent=11 // pred_check
          %p211 = pneg %p105
        $region14: #{tpu_custom_call.1} parent=11 // pred_check_branch
          %213 = sbr.rel (%p211) target = $region16
        $region15: #{tpu_custom_call.1} parent=11 // pred_region
          _
        $region16: #{tpu_custom_call.1} parent=11 // pred_fallthru
          _
        // Predicated region
        $region17: #{tpu_custom_call.1} parent=11 // pred_check
          %p214 = pneg %p126
        $region18: #{tpu_custom_call.1} parent=11 // pred_check_branch
          %216 = sbr.rel (%p214) target = $region20
        $region19: #{tpu_custom_call.1} parent=11 // pred_region
          _
        $region20: #{tpu_custom_call.1} parent=11 // pred_fallthru
          _
        // Predicated region
        $region21: #{tpu_custom_call.1} parent=11 // pred_check
          %p217 = pneg %p147
        $region22: #{tpu_custom_call.1} parent=11 // pred_check_branch
          %219 = sbr.rel (%p217) target = $region24
        $region23: #{tpu_custom_call.1} parent=11 // pred_region
          _
        $region24: #{tpu_custom_call.1} parent=11 // pred_fallthru
          _
        // Predicated region
        $region25: #{tpu_custom_call.1} parent=11 // pred_check
          %p220 = pneg %p168
        $region26: #{tpu_custom_call.1} parent=11 // pred_check_branch
          %222 = sbr.rel (%p220) target = $region28
        $region27: #{tpu_custom_call.1} parent=11 // pred_region
          _
        $region28: #{tpu_custom_call.1} parent=11 // pred_fallthru
          _
      $region12: #{tpu_custom_call.1} parent=5 // pred_fallthru
        _
      %p223 = scmp.lt.s32.totalorder %s18, 2
      // Predicated region
      $region29: #{tpu_custom_call.1} parent=5 // pred_check
        %p224 = pneg %p223
      $region30: #{tpu_custom_call.1} parent=5 // pred_check_branch
        %226 = sbr.rel (%p224) target = $region32
      $region31: #{tpu_custom_call.1} parent=5 // pred_region
        // Predicated region
        $region33: #{tpu_custom_call.1} parent=31 // pred_check
          %p227 = pneg %p50
        $region34: #{tpu_custom_call.1} parent=31 // pred_check_branch
          %229 = sbr.rel (%p227) target = $region36
        $region35: #{tpu_custom_call.1} parent=31 // pred_region
          %p230 = scmp.lt.s32.totalorder %s25, 1
          %s231 = scalar_select %p230, %s25, 1
          %s232 = smul.addr %s231, 2
          %s233 = smul.addr %s232, 4
          %s234 = scalar_lea.vmem %s0, %s233
        $region36: #{tpu_custom_call.1} parent=31 // pred_fallthru
          _
        // Predicated region
        $region37: #{tpu_custom_call.1} parent=31 // pred_check
          %p235 = pneg %p78
        $region38: #{tpu_custom_call.1} parent=31 // pred_check_branch
          %237 = sbr.rel (%p235) target = $region40
        $region39: #{tpu_custom_call.1} parent=31 // pred_region
          %s238 = sand.u32 %s68, 1
          %s239 = scalar_lea.sflag [#allocation4], %s238
          %s240 = sand.u32 %s68, 1
          %s241 = smul.addr %s240, 16
          %s242 = scalar_lea.vmem [#allocation3], %s241
          %s243 = smul.u32 2, %s26
          %245 = vsyncadd %s239, 0
          %s246 = smul.addr %s25, 2
          %s247 = sadd.s32 %s243, %s246
          %s248 = smul.addr %s247, 8
          %s249 = scalar_lea.hbm %s1, %s248
          %s251 = sshll.u32 %s249, 4
          %s252 = int_to_ptr.hbm [resolvable:$true] %s251
          %s253 = sshll.u32 %s242, 4
          %s254 = int_to_ptr.vmem [resolvable:$true] %s253
          %256 = dma.hbm_to_vmem [thread:$0]  %s252, 256, %s254, %s239
        $region40: #{tpu_custom_call.1} parent=31 // pred_fallthru
          _
      $region32: #{tpu_custom_call.1} parent=5 // pred_fallthru
        _
      %p257 = scmp.le.s32.totalorder 1, %s18
      %p258 = scmp.lt.s32.totalorder %s18, 3
      %p259 = pnand %p257, %p258
      %p260 = pneg %p259
      // Predicated region
      $region41: #{tpu_custom_call.1} parent=5 // pred_check
        _
      $region42: #{tpu_custom_call.1} parent=5 // pred_check_branch
        %262 = sbr.rel (%p259) target = $region44
      $region43: #{tpu_custom_call.1} parent=5 // pred_region
        %s263 = ssub.s32 %s18, 1
        %s264 = sand.u32 %s71, 1
        %s265 = scalar_lea.sflag [#allocation4], %s264
        %s266 = sand.u32 %s71, 1
        %s267 = smul.addr %s266, 16
        %s268 = scalar_lea.vmem [#allocation3], %s267
        // Predicated region
        $region45: #{tpu_custom_call.1} parent=43 // pred_check
          %p269 = pneg %p84
        $region46: #{tpu_custom_call.1} parent=43 // pred_check_branch
          %271 = sbr.rel (%p269) target = $region48
        $region47: #{tpu_custom_call.1} parent=43 // pred_region
          %273 = dma.done %s265, 256
        $region48: #{tpu_custom_call.1} parent=43 // pred_fallthru
          _
        %p274 = scmp.lt.s32.totalorder %s27, 1
        %s275 = scalar_select %p274, %s27, 1
        %s276 = smul.addr %s275, 2
        %s277 = smul.addr %s276, 4
        %s278 = scalar_lea.vmem %s0, %s277
        %p279 = pneg %p56
        %p280 = pneg %p53
        %s281 = sand.u32 %s71, 1
        %s282 = scalar_lea.sflag [#allocation4], %s281
        %s283 = sand.u32 %s71, 1
        %s284 = smul.addr %s283, 16
        %s285 = scalar_lea.vmem [#allocation3], %s284
        %p286 = pneg %p84
        %p287 = pneg %p81
        %p288 = pneg %p105
        %p289 = pneg %p102
        %p290 = pneg %p126
        %p291 = pneg %p123
        %p292 = pneg %p147
        %p293 = pneg %p144
        %p294 = pneg %p168
        %p295 = pneg %p165
        %p296 = pneg %p196
        %p297 = pneg %p193
        %s298 = sand.u32 %s183, 1
        %s299 = scalar_lea.sflag [#allocation5], %s298
        %s300 = sand.u32 %s183, 1
        %s301 = smul.addr %s300, 16
        %s302 = scalar_lea.vmem [#allocation6], %s301
        %p303 = scmp.lt.s32.totalorder %s27, 1
        %s304 = scalar_select %p303, %s27, 1
        %s305 = smul.addr %s304, 2
        %s306 = smul.addr %s305, 4
        %s307 = scalar_lea.vmem %s0, %s306
        %s308 = smul.u32 2, %s28
        %s309 = smul.u32 2, %s28
        %p310 = scmp.eq.s32.totalorder %s28, 0
        // Predicated region
        $region49: #{tpu_custom_call.1} parent=43 // pred_check
          %p311 = pneg %p310
        $region50: #{tpu_custom_call.1} parent=43 // pred_check_branch
          %313 = sbr.rel (%p311) target = $region52
        $region51: #{tpu_custom_call.1} parent=43 // pred_region
          %v314 = vld [vmem:[%s307] sm:$0xff]
          %316 = vst [vmem:[#allocation1] ss:$2 sm:$0xff] %v314
          %v317 = vld.sshfl [vmem:[#allocation1] sm:$0xff pattern:$0x75316420]
          %v318 = vld.sshfl [vmem:[#allocation1 + $0x8] sm:$0xff pattern:$0x75316420]
          %321 = vmatpush.msra.mxu0 1.0
          %322 = vmatpush.msra.mxu0 1.0
          %323 = vmatpush.msra.mxu0 1.0
          %324 = vmatpush.msra.mxu0 1.0
          %325 = vmatpush.msra.mxu0 1.0
          %326 = vmatpush.msra.mxu0 1.0
          %327 = vmatpush.msra.mxu0 1.0
          %328 = vmatpush.msra.mxu0 1.0
          %329 = vmatpush.msra.mxu0 1.0
          %330 = vmatpush.msra.mxu0 1.0
          %331 = vmatpush.msra.mxu0 1.0
          %332 = vmatpush.msra.mxu0 1.0
          %333 = vmatpush.msra.mxu0 1.0
          %334 = vmatpush.msra.mxu0 1.0
          %335 = vmatpush.msra.mxu0 1.0
          %336 = vmatpush.msra.mxu0 1.0
          %337 = vmatmul.f32.gmra.mxu0 %v317
          %v338 = vpop.f32.mrf.mxu0
          %v339 = vadd.f32 0.0, %v338
          %340 = vdwg.mxu0
          %341 = vmatpush.msra.mxu0 1.0
          %342 = vmatpush.msra.mxu0 1.0
          %343 = vmatpush.msra.mxu0 1.0
          %344 = vmatpush.msra.mxu0 1.0
          %345 = vmatpush.msra.mxu0 1.0
          %346 = vmatpush.msra.mxu0 1.0
          %347 = vmatpush.msra.mxu0 1.0
          %348 = vmatpush.msra.mxu0 1.0
          %349 = vmatpush.msra.mxu0 1.0
          %350 = vmatpush.msra.mxu0 1.0
          %351 = vmatpush.msra.mxu0 1.0
          %352 = vmatpush.msra.mxu0 1.0
          %353 = vmatpush.msra.mxu0 1.0
          %354 = vmatpush.msra.mxu0 1.0
          %355 = vmatpush.msra.mxu0 1.0
          %356 = vmatpush.msra.mxu0 1.0
          %357 = vmatmul.f32.gmra.mxu0 %v318
          %v358 = vpop.f32.mrf.mxu0
          %v359 = vadd.f32 %v339, %v358
          %360 = vdwg.mxu0
          %v361 = vmul.f32 %v359, 0.00390625
          %v362 = vld [vmem:[%s2] sm:$0xf]
          %v363 = vld [vmem:[%s3] sm:$0xf]
          %vm364 = vcmask 31744
          %v366 = vsel %vm364, %v362, 0
          %vm368 = vcmask 1043456
          %v370 = vsel %vm368, %v361, 0
          %372 = vmatpush.msra.mxu0 0.0
          %373 = vmatpush.msra.mxu0 0.0
          %374 = vmatpush.msra.mxu0 0.0
          %375 = vmatpush.msra.mxu0 0.0
          %376 = vmatpush.msra.mxu0 0.0
          %377 = vmatpush.msra.mxu0 0.0
          %378 = vmatpush.msra.mxu0 0.0
          %379 = vmatpush.msra.mxu0 0.0
          %380 = vmatpush.msra.mxu0 0.0
          %381 = vmatpush.msra.mxu0 0.0
          %382 = vmatpush.msra.mxu0 0.0
          %383 = vmatpush.msra.mxu0 0.0
          %384 = vmatpush.msra.mxu0 0.0
          %385 = vmatpush.msra.mxu0 0.0
          %386 = vmatpush.msra.mxu0 0.0
          %387 = vmatpush.msra.mxu0 %v370
          %388 = vmatmul.f32.gmra.mxu0 %v366
          %v389 = vpop.f32.mrf.mxu0
          %v390 = vadd.f32 %v363, %v389
          %391 = vdwg.mxu0
          %v392 = vxor.u32 %v390, 2147483648
          %v393 = vmul.f32 %v392, 1.442695
          %v394 = vpow.pop %v393
          %v395 = vadd.f32 %v394, 1.0
          %v396 = vrcp.pop %v395
          %v397 = vmul.f32 %v395, %v396
          %v398 = vsub.f32 1.0, %v397
          %v399 = vmul.f32 %v396, %v398
          %v400 = vadd.f32 %v396, %v399
          %vm401 = vweird.f32 %v395
          %vm402 = vweird.f32 %v396
          %vm403 = vmor %vm401, %vm402
          %v404 = vsel %vm403, %v396, %v400
          %v405 = vand.u32 2147483647, %v395
          %vm406 = vcmp.eq.f32.partialorder %v405, 8.507059e+37
          %v407 = vand.u32 %v395, 2147483648
          %v408 = vor.u32 1.1754944e-38, %v407
          %v409 = vsel %vm406, %v408, %v404
          %v410 = vmul.f32 1.0, %v409
          %v411 = vmul.f32 %v390, %v410
          %v412 = vld [vmem:[%s4] sm:$0xff]
          %v413 = vld [vmem:[%s5] sm:$0xff]
          %v415 = vsel %vm364, %v412, 0
          %v418 = vsel %vm368, %v411, 0
          %420 = vmatpush.msra.mxu0 0.0
          %421 = vmatpush.msra.mxu0 0.0
          %422 = vmatpush.msra.mxu0 0.0
          %423 = vmatpush.msra.mxu0 0.0
          %424 = vmatpush.msra.mxu0 0.0
          %425 = vmatpush.msra.mxu0 0.0
          %426 = vmatpush.msra.mxu0 0.0
          %427 = vmatpush.msra.mxu0 0.0
          %428 = vmatpush.msra.mxu0 0.0
          %429 = vmatpush.msra.mxu0 0.0
          %430 = vmatpush.msra.mxu0 0.0
          %431 = vmatpush.msra.mxu0 0.0
          %432 = vmatpush.msra.mxu0 0.0
          %433 = vmatpush.msra.mxu0 0.0
          %434 = vmatpush.msra.mxu0 0.0
          %435 = vmatpush.msra.mxu0 %v418
          %436 = vmatmul.f32.gmra.mxu0 %v415
          %v437 = vpop.f32.mrf.mxu0
          %v438 = vadd.f32 %v413, %v437
          %439 = vdwg.mxu0
          %v440 = vxor.u32 %v438, 2147483648
          %v441 = vmul.f32 %v440, 1.442695
          %v442 = vpow.pop %v441
          %v443 = vadd.f32 %v442, 1.0
          %v444 = vrcp.pop %v443
          %v445 = vmul.f32 %v443, %v444
          %v446 = vsub.f32 1.0, %v445
          %v447 = vmul.f32 %v444, %v446
          %v448 = vadd.f32 %v444, %v447
          %vm449 = vweird.f32 %v443
          %vm450 = vweird.f32 %v444
          %vm451 = vmor %vm449, %vm450
          %v452 = vsel %vm451, %v444, %v448
          %v453 = vand.u32 2147483647, %v443
          %vm454 = vcmp.eq.f32.partialorder %v453, 8.507059e+37
          %v455 = vand.u32 %v443, 2147483648
          %v456 = vor.u32 1.1754944e-38, %v455
          %v457 = vsel %vm454, %v456, %v452
          %v458 = vmul.f32 1.0, %v457
          %vm459 = vcmask 7168
          %460 = vst.msk [vmem:[#allocation2] sm:$0xff] %vm459, %v458
        $region52: #{tpu_custom_call.1} parent=43 // pred_fallthru
          _
        %v461 = vld [vmem:[%s268] sm:$0xff]
        %v462 = vld [vmem:[%s268 + $0x8] sm:$0xff]
        %v463 = vld [vmem:[#allocation2] sm:$0xff]
        %465 = vset.pattern.permute.xlu0 0
        %466 = vperm.xlu0 %465, %v463
        %v467 = vpop.permute.xlu0 %466
        %v469 = vmul.f32 %v461, %v467
        %v470 = vmul.f32 %v462, %v467
        %471 = vst [vmem:[%s302] sm:$0xff] %v469
        %472 = vst [vmem:[%s302 + $0x8] sm:$0xff] %v470
        %s473 = sand.u32 %s183, 1
        %s474 = scalar_lea.sflag [#allocation5], %s473
        %s475 = sand.u32 %s183, 1
        %s476 = smul.addr %s475, 16
        %s477 = scalar_lea.vmem [#allocation6], %s476
        // Predicated region
        $region53: #{tpu_custom_call.1} parent=43 // pred_check
          %p478 = pneg %p193
        $region54: #{tpu_custom_call.1} parent=43 // pred_check_branch
          %480 = sbr.rel (%p478) target = $region56
        $region55: #{tpu_custom_call.1} parent=43 // pred_region
          %s481 = smul.u32 2, %s28
          %483 = vsyncadd %s474, 0
          %s484 = smul.addr %s27, 2
          %s485 = sadd.s32 %s481, %s484
          %s486 = smul.addr %s485, 8
          %s487 = scalar_lea.hbm %s6, %s486
          %s489 = sshll.u32 %s477, 4
          %s490 = int_to_ptr.vmem [resolvable:$true] %s489
          %s491 = sshll.u32 %s487, 4
          %s492 = int_to_ptr.hbm [resolvable:$true] %s491
          %494 = dma.vmem_to_hbm [thread:$0]  %s490, 256, %s492, %s474
        $region56: #{tpu_custom_call.1} parent=43 // pred_fallthru
          _
      $region44: #{tpu_custom_call.1} parent=5 // pred_fallthru
        _
      %p495 = scmp.le.s32.totalorder 2, %s18
      // Predicated region
      $region57: #{tpu_custom_call.1} parent=5 // pred_check
        %p496 = pneg %p495
      $region58: #{tpu_custom_call.1} parent=5 // pred_check_branch
        %498 = sbr.rel (%p496) target = $region60
      $region59: #{tpu_custom_call.1} parent=5 // pred_region
        %s499 = ssub.s32 %s18, 2
        // Predicated region
        $region61: #{tpu_custom_call.1} parent=59 // pred_check
          %p500 = pneg %p199
        $region62: #{tpu_custom_call.1} parent=59 // pred_check_branch
          %502 = sbr.rel (%p500) target = $region64
        $region63: #{tpu_custom_call.1} parent=59 // pred_region
          %s503 = sand.u32 %s184, 1
          %s504 = scalar_lea.sflag [#allocation5], %s503
          %s505 = sand.u32 %s184, 1
          %s506 = smul.addr %s505, 16
          %s507 = scalar_lea.vmem [#allocation6], %s506
          %509 = dma.done %s504, 256
        $region64: #{tpu_custom_call.1} parent=59 // pred_fallthru
          _
      $region60: #{tpu_custom_call.1} parent=5 // pred_fallthru
        _
    $region6: #{tpu_custom_call.1} parent=1 // loop_footer
      %s22 = sadd.s32 1, %s18
    $region7: #{tpu_custom_call.1} parent=1 // loop_footer_branch
      %17 = sbr.rel target = $region3
    $region8: #{tpu_custom_call.1} parent=1 // loop_exit
      _
    %510 = vsyncpa [#allocation4], 1
    %s511 = scalar_lea.sflag [#allocation4], 1
    %512 = vsyncpa %s511, 1
    %513 = vsyncpa [#allocation5], 1
    %s514 = scalar_lea.sflag [#allocation5], 1
    %515 = vsyncpa %s514, 1

</llo_original>
